<compile_context>
chip_gen: v5e
topology: v5e:2x2
jax: 0.10.0
libtpu: 0.0.40
codegen_flags: <defaults>
</compile_context>

<pallas_src>
import numpy as np
import jax
import jax.numpy as jnp
from jax.experimental import pallas as pl
from jax.experimental.pallas import tpu as pltpu

LANE = 128        # TPU lane width; hidden (42) and input dims are zero-padded to this
N_LAYERS = 6      # fc1, fc2, fc3, fc4, fc9, fc10


def mlp_kernel(x_ref, w_ref, b_ref, out_ref):
    """One batch block of the 6-layer MLP.

    x_ref:   (TB, LANE)              compute dtype (f32 or bf16), zero-padded lanes
    w_ref:   (N_LAYERS, LANE, LANE)  compute dtype, pre-transposed to (in, out), zero-padded
    b_ref:   (N_LAYERS, 1, LANE)     f32, zero-padded
    out_ref: (TB, LANE)              f32 (only lane 0 is meaningful)
    """
    h = x_ref[...]
    for k in range(N_LAYERS - 1):
        y = jnp.dot(h, w_ref[k], preferred_element_type=jnp.float32) + b_ref[k]
        h = jnp.maximum(y, 0.0).astype(w_ref.dtype)          # relu, back to MXU dtype
    y = jnp.dot(h, w_ref[N_LAYERS - 1], preferred_element_type=jnp.float32) \
        + b_ref[N_LAYERS - 1]
    out_ref[...] = jnp.tanh(y).astype(out_ref.dtype)          # tanh on EUP


def _round_up(x, m):
    return (x + m - 1) // m * m


def net_forward(x, params, *, compute_dtype=jnp.float32, block_rows=512):
    """x: (B, size) f32.  params: 6 tuples (W (in,out), b (1,out)) for fc1..4, fc9, fc10."""
    B, size = x.shape
    assert size <= LANE, "input feature dim must fit in one 128-lane tile"

    # --- pack + zero-pad parameters: (6, 128, 128) weights, (6, 1, 128) biases ---
    w_blocks, b_blocks = [], []
    for w, b in params:
        din, dout = w.shape
        wp = jnp.zeros((LANE, LANE), jnp.float32).at[:din, :dout].set(w)
        bp = jnp.zeros((1, LANE), jnp.float32).at[:, :dout].set(b)   # padded biases = 0
        w_blocks.append(wp)
        b_blocks.append(bp)
    w_packed = jnp.stack(w_blocks).astype(compute_dtype)   # (6, 128, 128)
    b_packed = jnp.stack(b_blocks)                          # (6, 1, 128) f32

    # --- pad batch to a multiple of the block size, input dim to 128 lanes ---
    TB = min(block_rows, _round_up(B, 8))
    B_pad = _round_up(B, TB)
    x_p = (jnp.zeros((B_pad, LANE), compute_dtype)
           .at[:B, :size].set(x.astype(compute_dtype)))

    grid = (B_pad // TB,)
    itemsize = np.dtype(compute_dtype).itemsize
    cost = pl.CostEstimate(
        flops=2 * B_pad * N_LAYERS * LANE * LANE,
        transcendentals=B_pad * LANE,                          # tanh
        bytes_accessed=(B_pad * LANE * itemsize                # x in
                        + N_LAYERS * LANE * LANE * itemsize    # weights (resident)
                        + N_LAYERS * LANE * 4                  # biases
                        + B_pad * LANE * 4))                   # out

    out_padded = pl.pallas_call(
        mlp_kernel,
        out_shape=jax.ShapeDtypeStruct((B_pad, LANE), jnp.float32),
        grid_spec=pltpu.PrefetchScalarGridSpec(
            num_scalar_prefetch=0,
            grid=grid,
            in_specs=[
                pl.BlockSpec((TB, LANE), lambda i: (i, 0)),                 # x: streamed
                pl.BlockSpec((N_LAYERS, LANE, LANE), lambda i: (0, 0, 0)),  # W: resident
                pl.BlockSpec((N_LAYERS, 1, LANE), lambda i: (0, 0, 0)),     # b: resident
            ],
            out_specs=pl.BlockSpec((TB, LANE), lambda i: (i, 0)),           # lane-dense out
        ),
        compiler_params=pltpu.CompilerParams(
            dimension_semantics=("parallel",)),   # shard batch blocks across v7x's 2 TCs
        cost_estimate=cost,
    )(x_p, w_packed, b_packed)

    return out_padded[:B, :1]


def init_params(key, size):
    """Deterministic init matching the PyTorch layer shapes (fc1..fc4, fc9, fc10)."""
    dims = [(size, 42), (42, 42), (42, 42), (42, 42), (42, 42), (42, 1)]
    params = []
    for i, (din, dout) in enumerate(dims):
        kw, kb = jax.random.split(jax.random.fold_in(key, i))
        bound = 1.0 / np.sqrt(din)
        # stored directly as (in, out), i.e. already transposed vs. torch's (out, in)
        w = jax.random.uniform(kw, (din, dout), jnp.float32, -bound, bound)
        b = jax.random.uniform(kb, (1, dout), jnp.float32, -bound, bound)
        params.append((w, b))
    return params


def reference_forward(x, params):
    h = x
    for w, b in params[:-1]:
        h = jnp.maximum(h @ w + b, 0.0)
    w, b = params[-1]
    return jnp.tanh(h @ w + b)


if __name__ == "__main__":
    size = 32
    batch = 100   # deliberately not a multiple of the block size (exercises padding)
    key = jax.random.PRNGKey(0)
    kx, kp = jax.random.split(key)

    x = jax.random.normal(kx, (batch, size), jnp.float32)
    params = init_params(kp, size)
    ref = reference_forward(x, params)

    # f32 operands; block_rows=32 -> 4-step batch grid at this toy size.
    out_f32 = jax.block_until_ready(
        net_forward(x, params, compute_dtype=jnp.float32, block_rows=32))
    assert out_f32.shape == (batch, 1)
    assert jnp.allclose(out_f32, ref, atol=1e-4, rtol=1e-4)

    # bf16 operands + f32 accumulation: the fast path on v6e/v7x MXUs.
    out_bf16 = jax.block_until_ready(
        net_forward(x, params, compute_dtype=jnp.bfloat16, block_rows=32))
    assert out_bf16.shape == (batch, 1)
    assert jnp.allclose(out_bf16, ref, atol=1e-1, rtol=1e-1)

    print("KERNEL_OK")
</pallas_src>

<mosaic_0001>
module attributes {stable_mosaic.version = 11 : i64} {
  func.func @mlp_kernel(%arg0: i32, %arg1: memref<32x128xf32, #tpu.memory_space<vmem>>, %arg2: memref<6x128x128xf32, #tpu.memory_space<vmem>>, %arg3: memref<6x1x128xf32, #tpu.memory_space<vmem>>, %arg4: memref<32x128xf32, #tpu.memory_space<vmem>>) attributes {dimension_semantics = [#tpu.dimension_semantics<parallel>], iteration_bounds = array<i64: 4>, scalar_prefetch = 0 : i64, scratch_operands = 0 : i64, tpu.core_type = #tpu.core_type<tc>, window_params = [{transform_indices = @transform_0, window_bounds = array<i64: 32, 128>}, {pipeline_mode = #tpu.pipeline_mode<synchronous>, transform_indices = @transform_1, window_bounds = array<i64: 6, 128, 128>}, {pipeline_mode = #tpu.pipeline_mode<synchronous>, transform_indices = @transform_2, window_bounds = array<i64: 6, 1, 128>}, {transform_indices = @transform_3, window_bounds = array<i64: 32, 128>}]} {
    %c0 = arith.constant 0 : index
    %c0_0 = arith.constant 0 : index
    %0 = vector.load %arg1[%c0, %c0_0] : memref<32x128xf32, #tpu.memory_space<vmem>>, vector<32x128xf32>
    %c0_1 = arith.constant 0 : index
    %c0_2 = arith.constant 0 : index
    %c0_3 = arith.constant 0 : index
    %1 = vector.load %arg2[%c0_1, %c0_2, %c0_3] : memref<6x128x128xf32, #tpu.memory_space<vmem>>, vector<1x128x128xf32>
    %2 = vector.shape_cast %1 : vector<1x128x128xf32> to vector<128x128xf32>
    %cst = arith.constant dense<0.000000e+00> : vector<32x128xf32>
    %3 = tpu.matmul %0, %2, %cst {dimension_numbers = #tpu.dot_dimension_numbers<[1], [0], [0], [1], [0, 0, 1, 1], [], []>} : vector<32x128xf32>, vector<128x128xf32>, vector<32x128xf32> -> vector<32x128xf32>
    %c0_4 = arith.constant 0 : index
    %c0_5 = arith.constant 0 : index
    %c0_6 = arith.constant 0 : index
    %4 = vector.load %arg3[%c0_4, %c0_5, %c0_6] : memref<6x1x128xf32, #tpu.memory_space<vmem>>, vector<1x1x128xf32>
    %5 = vector.shape_cast %4 : vector<1x1x128xf32> to vector<1x128xf32>
    %6 = vector.broadcast %5 : vector<1x128xf32> to vector<32x128xf32>
    %7 = arith.addf %3, %6 : vector<32x128xf32>
    %cst_7 = arith.constant 0.000000e+00 : f32
    %8 = vector.broadcast %cst_7 : f32 to vector<32x128xf32>
    %9 = arith.maximumf %7, %8 : vector<32x128xf32>
    %c1 = arith.constant 1 : index
    %c0_8 = arith.constant 0 : index
    %c0_9 = arith.constant 0 : index
    %10 = vector.load %arg2[%c1, %c0_8, %c0_9] : memref<6x128x128xf32, #tpu.memory_space<vmem>>, vector<1x128x128xf32>
    %11 = vector.shape_cast %10 : vector<1x128x128xf32> to vector<128x128xf32>
    %cst_10 = arith.constant dense<0.000000e+00> : vector<32x128xf32>
    %12 = tpu.matmul %9, %11, %cst_10 {dimension_numbers = #tpu.dot_dimension_numbers<[1], [0], [0], [1], [0, 0, 1, 1], [], []>} : vector<32x128xf32>, vector<128x128xf32>, vector<32x128xf32> -> vector<32x128xf32>
    %c1_11 = arith.constant 1 : index
    %c0_12 = arith.constant 0 : index
    %c0_13 = arith.constant 0 : index
    %13 = vector.load %arg3[%c1_11, %c0_12, %c0_13] : memref<6x1x128xf32, #tpu.memory_space<vmem>>, vector<1x1x128xf32>
    %14 = vector.shape_cast %13 : vector<1x1x128xf32> to vector<1x128xf32>
    %15 = vector.broadcast %14 : vector<1x128xf32> to vector<32x128xf32>
    %16 = arith.addf %12, %15 : vector<32x128xf32>
    %cst_14 = arith.constant 0.000000e+00 : f32
    %17 = vector.broadcast %cst_14 : f32 to vector<32x128xf32>
    %18 = arith.maximumf %16, %17 : vector<32x128xf32>
    %c2 = arith.constant 2 : index
    %c0_15 = arith.constant 0 : index
    %c0_16 = arith.constant 0 : index
    %19 = vector.load %arg2[%c2, %c0_15, %c0_16] : memref<6x128x128xf32, #tpu.memory_space<vmem>>, vector<1x128x128xf32>
    %20 = vector.shape_cast %19 : vector<1x128x128xf32> to vector<128x128xf32>
    %cst_17 = arith.constant dense<0.000000e+00> : vector<32x128xf32>
    %21 = tpu.matmul %18, %20, %cst_17 {dimension_numbers = #tpu.dot_dimension_numbers<[1], [0], [0], [1], [0, 0, 1, 1], [], []>} : vector<32x128xf32>, vector<128x128xf32>, vector<32x128xf32> -> vector<32x128xf32>
    %c2_18 = arith.constant 2 : index
    %c0_19 = arith.constant 0 : index
    %c0_20 = arith.constant 0 : index
    %22 = vector.load %arg3[%c2_18, %c0_19, %c0_20] : memref<6x1x128xf32, #tpu.memory_space<vmem>>, vector<1x1x128xf32>
    %23 = vector.shape_cast %22 : vector<1x1x128xf32> to vector<1x128xf32>
    %24 = vector.broadcast %23 : vector<1x128xf32> to vector<32x128xf32>
    %25 = arith.addf %21, %24 : vector<32x128xf32>
    %cst_21 = arith.constant 0.000000e+00 : f32
    %26 = vector.broadcast %cst_21 : f32 to vector<32x128xf32>
    %27 = arith.maximumf %25, %26 : vector<32x128xf32>
    %c3 = arith.constant 3 : index
    %c0_22 = arith.constant 0 : index
    %c0_23 = arith.constant 0 : index
    %28 = vector.load %arg2[%c3, %c0_22, %c0_23] : memref<6x128x128xf32, #tpu.memory_space<vmem>>, vector<1x128x128xf32>
    %29 = vector.shape_cast %28 : vector<1x128x128xf32> to vector<128x128xf32>
    %cst_24 = arith.constant dense<0.000000e+00> : vector<32x128xf32>
    %30 = tpu.matmul %27, %29, %cst_24 {dimension_numbers = #tpu.dot_dimension_numbers<[1], [0], [0], [1], [0, 0, 1, 1], [], []>} : vector<32x128xf32>, vector<128x128xf32>, vector<32x128xf32> -> vector<32x128xf32>
    %c3_25 = arith.constant 3 : index
    %c0_26 = arith.constant 0 : index
    %c0_27 = arith.constant 0 : index
    %31 = vector.load %arg3[%c3_25, %c0_26, %c0_27] : memref<6x1x128xf32, #tpu.memory_space<vmem>>, vector<1x1x128xf32>
    %32 = vector.shape_cast %31 : vector<1x1x128xf32> to vector<1x128xf32>
    %33 = vector.broadcast %32 : vector<1x128xf32> to vector<32x128xf32>
    %34 = arith.addf %30, %33 : vector<32x128xf32>
    %cst_28 = arith.constant 0.000000e+00 : f32
    %35 = vector.broadcast %cst_28 : f32 to vector<32x128xf32>
    %36 = arith.maximumf %34, %35 : vector<32x128xf32>
    %c4 = arith.constant 4 : index
    %c0_29 = arith.constant 0 : index
    %c0_30 = arith.constant 0 : index
    %37 = vector.load %arg2[%c4, %c0_29, %c0_30] : memref<6x128x128xf32, #tpu.memory_space<vmem>>, vector<1x128x128xf32>
    %38 = vector.shape_cast %37 : vector<1x128x128xf32> to vector<128x128xf32>
    %cst_31 = arith.constant dense<0.000000e+00> : vector<32x128xf32>
    %39 = tpu.matmul %36, %38, %cst_31 {dimension_numbers = #tpu.dot_dimension_numbers<[1], [0], [0], [1], [0, 0, 1, 1], [], []>} : vector<32x128xf32>, vector<128x128xf32>, vector<32x128xf32> -> vector<32x128xf32>
    %c4_32 = arith.constant 4 : index
    %c0_33 = arith.constant 0 : index
    %c0_34 = arith.constant 0 : index
    %40 = vector.load %arg3[%c4_32, %c0_33, %c0_34] : memref<6x1x128xf32, #tpu.memory_space<vmem>>, vector<1x1x128xf32>
    %41 = vector.shape_cast %40 : vector<1x1x128xf32> to vector<1x128xf32>
    %42 = vector.broadcast %41 : vector<1x128xf32> to vector<32x128xf32>
    %43 = arith.addf %39, %42 : vector<32x128xf32>
    %cst_35 = arith.constant 0.000000e+00 : f32
    %44 = vector.broadcast %cst_35 : f32 to vector<32x128xf32>
    %45 = arith.maximumf %43, %44 : vector<32x128xf32>
    %c5 = arith.constant 5 : index
    %c0_36 = arith.constant 0 : index
    %c0_37 = arith.constant 0 : index
    %46 = vector.load %arg2[%c5, %c0_36, %c0_37] : memref<6x128x128xf32, #tpu.memory_space<vmem>>, vector<1x128x128xf32>
    %47 = vector.shape_cast %46 : vector<1x128x128xf32> to vector<128x128xf32>
    %cst_38 = arith.constant dense<0.000000e+00> : vector<32x128xf32>
    %48 = tpu.matmul %45, %47, %cst_38 {dimension_numbers = #tpu.dot_dimension_numbers<[1], [0], [0], [1], [0, 0, 1, 1], [], []>} : vector<32x128xf32>, vector<128x128xf32>, vector<32x128xf32> -> vector<32x128xf32>
    %c5_39 = arith.constant 5 : index
    %c0_40 = arith.constant 0 : index
    %c0_41 = arith.constant 0 : index
    %49 = vector.load %arg3[%c5_39, %c0_40, %c0_41] : memref<6x1x128xf32, #tpu.memory_space<vmem>>, vector<1x1x128xf32>
    %50 = vector.shape_cast %49 : vector<1x1x128xf32> to vector<1x128xf32>
    %51 = vector.broadcast %50 : vector<1x128xf32> to vector<32x128xf32>
    %52 = arith.addf %48, %51 : vector<32x128xf32>
    %53 = math.tanh %52 : vector<32x128xf32>
    %c0_42 = arith.constant 0 : index
    %c0_43 = arith.constant 0 : index
    %54 = vector.load %arg4[%c0_42, %c0_43] : memref<32x128xf32, #tpu.memory_space<vmem>>, vector<32x128xf32>
    tpu.vector_store %arg4[%c0_42, %c0_43], %53 {strides = array<i32>} : memref<32x128xf32, #tpu.memory_space<vmem>>, vector<32x128xf32>,
    return
  }
  func.func @transform_0(%arg0: i32) -> (i32, i32) {
    %c0_i32 = arith.constant 0 : i32
    %c0_i32_0 = arith.constant 0 : i32
    return %arg0, %c0_i32 : i32, i32
  }
  func.func @transform_1(%arg0: i32) -> (i32, i32, i32) {
    %c0_i32 = arith.constant 0 : i32
    %c0_i32_0 = arith.constant 0 : i32
    %c0_i32_1 = arith.constant 0 : i32
    %c0_i32_2 = arith.constant 0 : i32
    return %c0_i32, %c0_i32_0, %c0_i32_1 : i32, i32, i32
  }
  func.func @transform_2(%arg0: i32) -> (i32, i32, i32) {
    %c0_i32 = arith.constant 0 : i32
    %c0_i32_0 = arith.constant 0 : i32
    %c0_i32_1 = arith.constant 0 : i32
    %c0_i32_2 = arith.constant 0 : i32
    return %c0_i32, %c0_i32_0, %c0_i32_1 : i32, i32, i32
  }
  func.func @transform_3(%arg0: i32) -> (i32, i32) {
    %c0_i32 = arith.constant 0 : i32
    %c0_i32_0 = arith.constant 0 : i32
    return %arg0, %c0_i32 : i32, i32
  }
}

</mosaic_0001>

<llo_original>
// kernel: tpu_custom_call.1
$region0: #{tpu_custom_call.1}
  #allocation0 [shape = 'u32[]', space=smem, size = 0x4, offset = 0x4, fixed_abs, tag = 'smem constant byte address 0x4 - core index']
  #allocation1 [shape = 'u32[72,128]{1,0:T(1,128)}', space=vmem, size = 0x9000, scoped, tag = 'internal scratch']
  %s0 = inlined_call_operand.hbm [shape: f32[128,128], index: 0, kind: input, shape index: {}]
  %s1 = inlined_call_operand.hbm [shape: f32[6,128,128], index: 1, kind: input, shape index: {}]
  %s2 = inlined_call_operand.hbm [shape: f32[6,1,128], index: 2, kind: input, shape index: {}]
  %s3 = inlined_call_operand.hbm [shape: f32[128,128], index: 3, kind: output, shape index: {}]
  %s4 = sld [smem:[#allocation0]]
  $region57: #{tpu_custom_call.1} parent=0
    _
  %s6 = ssub.s32 1, %s4
  %s7 = scalar_select 0, %s6, %s4
  $region1: #{tpu_custom_call.1} parent=0
    #allocation2 [shape = 'u8[32768]{0}', space=vmem, size = 0x8000, scoped, tag = 'input window, operand 0']
    #allocation3 [shape = 's32[2]{0}', space=sflag, size = 0x8, scoped, tag = 'scoped memory for tpu_custom_call.1']
    #allocation4 [shape = 's32[2]{0}', space=sflag, size = 0x8, scoped, tag = 'scoped memory for tpu_custom_call.1']
    #allocation5 [shape = 'u8[393216]{0}', space=vmem, size = 0x60000, scoped, tag = 'input window, operand 1, single buffered']
    #allocation6 [shape = 's32[1]{0}', space=sflag, size = 0x4, scoped, tag = 'scoped memory for tpu_custom_call.1']
    #allocation7 [shape = 'u8[3072]{0}', space=vmem, size = 0xc00, scoped, tag = 'input window, operand 2, single buffered']
    #allocation8 [shape = 'u8[32768]{0}', space=vmem, size = 0x8000, scoped, tag = 'output window, operand 0']
    %8 = vsyncpa [#allocation3], 0
    %s9 = scalar_lea.sflag [#allocation3], 1
    %10 = vsyncpa %s9, 0
    %11 = vsyncpa [#allocation6], 0
    %12 = vsyncpa [#allocation4], 0
    %s13 = scalar_lea.sflag [#allocation4], 1
    %14 = vsyncpa %s13, 0
    loop: start=0, step=1, limit=6
    $region2: #{tpu_custom_call.1} parent=1 // loop_pre_header
      _
    $region3: #{tpu_custom_call.1} parent=1 // loop_header
      %s16 = sphi 0, %s20
      %p17 = scmp.ge.s32.totalorder %s16, 6
      %s26 = sphi 0, %s28
      %s29 = sphi 0, %s26
      %s30 = sphi 0, %s29
      %s46 = sphi 0, %s30
      %s50 = sphi 0, %s50
      %s52 = sphi 0, %s50
      %s53 = sphi 0, %s52
      %s67 = sphi 0, %s53
      %s71 = sphi 0, %s71
      %s73 = sphi 0, %s71
      %s74 = sphi 0, %s73
      %s88 = sphi 0, %s74
      %s94 = sphi 0, %s96
      %s97 = sphi 0, %s94
      %s98 = sphi 0, %s97
      %s114 = sphi 0, %s98
    $region4: #{tpu_custom_call.1} parent=1 // loop_header_branch
      %19 = sbr.rel (%p17) target = $region8
    $region5: #{tpu_custom_call.1} parent=1 // loop_body
      %s21 = ssub.s32 %s16, 1
      %s22 = ssub.s32 %s16, 2
      %s23 = sadd.s32 %s16, 1
      %s24 = ssub.s32 %s16, %s23
      %p25 = scmp.eq.s32.totalorder %s24, 0
      %s27 = sadd.s32 %s26, 1
      %s28 = scalar_select %p25, %s26, %s27
      %p31 = pneg %p25
      %p32 = scmp.eq.s32.totalorder %s16, 3
      %p33 = por %p31, %p32
      %p34 = scmp.ne.s32.totalorder %s26, %s29
      %p35 = scmp.eq.s32.totalorder %s16, 0
      %p36 = por %p34, %p35
      %p37 = scmp.ne.s32.totalorder %s26, %s29
      %p38 = scmp.eq.s32.totalorder %s21, 3
      %p39 = por %p37, %p38
      %p40 = scmp.ne.s32.totalorder %s29, %s30
      %p41 = scmp.eq.s32.totalorder %s21, 0
      %p42 = por %p40, %p41
      %p43 = scmp.ne.s32.totalorder %s29, %s30
      %p44 = scmp.eq.s32.totalorder %s22, 3
      %p45 = por %p43, %p44
      %p47 = scmp.ne.s32.totalorder %s30, %s46
      %p48 = scmp.eq.s32.totalorder %s22, 0
      %p49 = por %p47, %p48
      %s51 = sadd.s32 %s50, 1
      %p54 = scmp.eq.s32.totalorder %s16, 3
      %p55 = scmp.ne.s32.totalorder %s50, %s52
      %p56 = scmp.eq.s32.totalorder %s16, 0
      %p57 = por %p55, %p56
      %p58 = scmp.ne.s32.totalorder %s50, %s52
      %p59 = scmp.eq.s32.totalorder %s21, 3
      %p60 = por %p58, %p59
      %p61 = scmp.ne.s32.totalorder %s52, %s53
      %p62 = scmp.eq.s32.totalorder %s21, 0
      %p63 = por %p61, %p62
      %p64 = scmp.ne.s32.totalorder %s52, %s53
      %p65 = scmp.eq.s32.totalorder %s22, 3
      %p66 = por %p64, %p65
      %p68 = scmp.ne.s32.totalorder %s53, %s67
      %p69 = scmp.eq.s32.totalorder %s22, 0
      %p70 = por %p68, %p69
      %s72 = sadd.s32 %s71, 1
      %p75 = scmp.eq.s32.totalorder %s16, 3
      %p76 = scmp.ne.s32.totalorder %s71, %s73
      %p77 = scmp.eq.s32.totalorder %s16, 0
      %p78 = por %p76, %p77
      %p79 = scmp.ne.s32.totalorder %s71, %s73
      %p80 = scmp.eq.s32.totalorder %s21, 3
      %p81 = por %p79, %p80
      %p82 = scmp.ne.s32.totalorder %s73, %s74
      %p83 = scmp.eq.s32.totalorder %s21, 0
      %p84 = por %p82, %p83
      %p85 = scmp.ne.s32.totalorder %s73, %s74
      %p86 = scmp.eq.s32.totalorder %s22, 3
      %p87 = por %p85, %p86
      %p89 = scmp.ne.s32.totalorder %s74, %s88
      %p90 = scmp.eq.s32.totalorder %s22, 0
      %p91 = por %p89, %p90
      %s92 = ssub.s32 %s16, %s23
      %p93 = scmp.eq.s32.totalorder %s92, 0
      %s95 = sadd.s32 %s94, 1
      %s96 = scalar_select %p93, %s94, %s95
      %p99 = pneg %p93
      %p100 = scmp.eq.s32.totalorder %s16, 3
      %p101 = por %p99, %p100
      %p102 = scmp.ne.s32.totalorder %s94, %s97
      %p103 = scmp.eq.s32.totalorder %s16, 0
      %p104 = por %p102, %p103
      %p105 = scmp.ne.s32.totalorder %s94, %s97
      %p106 = scmp.eq.s32.totalorder %s21, 3
      %p107 = por %p105, %p106
      %p108 = scmp.ne.s32.totalorder %s97, %s98
      %p109 = scmp.eq.s32.totalorder %s21, 0
      %p110 = por %p108, %p109
      %p111 = scmp.ne.s32.totalorder %s97, %s98
      %p112 = scmp.eq.s32.totalorder %s22, 3
      %p113 = por %p111, %p112
      %p115 = scmp.ne.s32.totalorder %s98, %s114
      %p116 = scmp.eq.s32.totalorder %s22, 0
      %p117 = por %p115, %p116
      %p118 = scmp.le.s32.totalorder 1, %s16
      %p119 = scmp.lt.s32.totalorder %s16, 5
      %p120 = pnand %p118, %p119
      %p121 = pneg %p120
      // Predicated region
      $region9: #{tpu_custom_call.1} parent=5 // pred_check
        _
      $region10: #{tpu_custom_call.1} parent=5 // pred_check_branch
        %123 = sbr.rel (%p120) target = $region12
      $region11: #{tpu_custom_call.1} parent=5 // pred_region
        %s124 = ssub.s32 %s16, 1
        // Predicated region
        $region13: #{tpu_custom_call.1} parent=11 // pred_check
          %p125 = pneg %p63
        $region14: #{tpu_custom_call.1} parent=11 // pred_check_branch
          %127 = sbr.rel (%p125) target = $region16
        $region15: #{tpu_custom_call.1} parent=11 // pred_region
          %129 = vsyncadd [#allocation6], 0
          %s130 = sshll.u32 %s1, 4
          %s131 = int_to_ptr.hbm [resolvable:$true] %s130
          %s132 = sshll.u32 [#allocation5], 4
          %s133 = int_to_ptr.vmem [resolvable:$true] %s132
          %138 = dma.hbm_to_vmem [thread:$0]  %s131, 12288, %s133, [#allocation6], 128, 128, 8
        $region16: #{tpu_custom_call.1} parent=11 // pred_fallthru
          _
        // Predicated region
        $region17: #{tpu_custom_call.1} parent=11 // pred_check
          %p139 = pneg %p84
        $region18: #{tpu_custom_call.1} parent=11 // pred_check_branch
          %141 = sbr.rel (%p139) target = $region20
        $region19: #{tpu_custom_call.1} parent=11 // pred_region
          %143 = vsyncadd [#allocation6], 0
          %s144 = sshll.u32 %s2, 4
          %s145 = int_to_ptr.hbm [resolvable:$true] %s144
          %s146 = sshll.u32 [#allocation7], 4
          %s147 = int_to_ptr.vmem [resolvable:$true] %s146
          %152 = dma.hbm_to_vmem [thread:$0]  %s145, 96, %s147, [#allocation6], 16, 16, 1
        $region20: #{tpu_custom_call.1} parent=11 // pred_fallthru
          _
      $region12: #{tpu_custom_call.1} parent=5 // pred_fallthru
        _
      %p153 = scmp.lt.s32.totalorder %s16, 4
      // Predicated region
      $region21: #{tpu_custom_call.1} parent=5 // pred_check
        %p154 = pneg %p153
      $region22: #{tpu_custom_call.1} parent=5 // pred_check_branch
        %156 = sbr.rel (%p154) target = $region24
      $region23: #{tpu_custom_call.1} parent=5 // pred_region
        // Predicated region
        $region25: #{tpu_custom_call.1} parent=23 // pred_check
          %p157 = pneg %p36
        $region26: #{tpu_custom_call.1} parent=23 // pred_check_branch
          %159 = sbr.rel (%p157) target = $region28
        $region27: #{tpu_custom_call.1} parent=23 // pred_region
          %s160 = sand.u32 %s26, 1
          %s161 = scalar_lea.sflag [#allocation3], %s160
          %s162 = sand.u32 %s26, 1
          %s163 = smul.addr %s162, 32
          %s164 = scalar_lea.vmem [#allocation2], %s163
          %s165 = smul.u32 4, %s16
          %167 = vsyncadd %s161, 0
          %s168 = smul.addr %s165, 8
          %s169 = scalar_lea.hbm %s0, %s168
          %s170 = sshll.u32 %s169, 4
          %s171 = int_to_ptr.hbm [resolvable:$true] %s170
          %s172 = sshll.u32 %s164, 4
          %s173 = int_to_ptr.vmem [resolvable:$true] %s172
          %178 = dma.hbm_to_vmem [thread:$0]  %s171, 512, %s173, %s161, 128, 128, 8
        $region28: #{tpu_custom_call.1} parent=23 // pred_fallthru
          _
      $region24: #{tpu_custom_call.1} parent=5 // pred_fallthru
        _
      %p179 = scmp.le.s32.totalorder 1, %s16
      %p180 = scmp.lt.s32.totalorder %s16, 5
      %p181 = pnand %p179, %p180
      %p182 = pneg %p181
      // Predicated region
      $region29: #{tpu_custom_call.1} parent=5 // pred_check
        _
      $region30: #{tpu_custom_call.1} parent=5 // pred_check_branch
        %184 = sbr.rel (%p181) target = $region32
      $region31: #{tpu_custom_call.1} parent=5 // pred_region
        %s185 = ssub.s32 %s16, 1
        %s186 = sand.u32 %s29, 1
        %s187 = scalar_lea.sflag [#allocation3], %s186
        %s188 = sand.u32 %s29, 1
        %s189 = smul.addr %s188, 32
        %s190 = scalar_lea.vmem [#allocation2], %s189
        // Predicated region
        $region33: #{tpu_custom_call.1} parent=31 // pred_check
          %p191 = pneg %p42
        $region34: #{tpu_custom_call.1} parent=31 // pred_check_branch
          %193 = sbr.rel (%p191) target = $region36
        $region35: #{tpu_custom_call.1} parent=31 // pred_region
          %195 = dma.done %s187, 512
        $region36: #{tpu_custom_call.1} parent=31 // pred_fallthru
          _
        // Predicated region
        $region37: #{tpu_custom_call.1} parent=31 // pred_check
          %p196 = pneg %p63
        $region38: #{tpu_custom_call.1} parent=31 // pred_check_branch
          %198 = sbr.rel (%p196) target = $region40
        $region39: #{tpu_custom_call.1} parent=31 // pred_region
          %200 = dma.done [#allocation6], 12288
        $region40: #{tpu_custom_call.1} parent=31 // pred_fallthru
          _
        // Predicated region
        $region41: #{tpu_custom_call.1} parent=31 // pred_check
          %p201 = pneg %p84
        $region42: #{tpu_custom_call.1} parent=31 // pred_check_branch
          %203 = sbr.rel (%p201) target = $region44
        $region43: #{tpu_custom_call.1} parent=31 // pred_region
          %205 = dma.done [#allocation6], 96
        $region44: #{tpu_custom_call.1} parent=31 // pred_fallthru
          _
        %s206 = sand.u32 %s29, 1
        %s207 = scalar_lea.sflag [#allocation3], %s206
        %s208 = sand.u32 %s29, 1
        %s209 = smul.addr %s208, 32
        %s210 = scalar_lea.vmem [#allocation2], %s209
        %p211 = pneg %p42
        %p212 = pneg %p39
        %p213 = pneg %p63
        %p214 = pneg %p60
        %p215 = pneg %p84
        %p216 = pneg %p81
        %p217 = pneg %p110
        %p218 = pneg %p107
        %s219 = sand.u32 %s97, 1
        %s220 = scalar_lea.sflag [#allocation4], %s219
        %s221 = sand.u32 %s97, 1
        %s222 = smul.addr %s221, 32
        %s223 = scalar_lea.vmem [#allocation8], %s222
        %s224 = smul.u32 4, %s21
        %s225 = smul.u32 4, %s21
        %v226 = vld [vmem:[%s190] sm:$0xff]
        %v227 = vld [vmem:[%s190 + $0x8] sm:$0xff]
        %v228 = vld [vmem:[%s190 + $0x10] sm:$0xff]
        %v229 = vld [vmem:[%s190 + $0x18] sm:$0xff]
        %v230 = vld [vmem:[#allocation5] sm:$0xff]
        %v231 = vld [vmem:[#allocation5 + $0x8] sm:$0xff]
        %v232 = vld [vmem:[#allocation5 + $0x10] sm:$0xff]
        %v233 = vld [vmem:[#allocation5 + $0x18] sm:$0xff]
        %v234 = vld [vmem:[#allocation5 + $0x20] sm:$0xff]
        %v235 = vld [vmem:[#allocation5 + $0x28] sm:$0xff]
        %v236 = vld [vmem:[#allocation5 + $0x30] sm:$0xff]
        %v237 = vld [vmem:[#allocation5 + $0x38] sm:$0xff]
        %v238 = vld [vmem:[#allocation5 + $0x40] sm:$0xff]
        %v239 = vld [vmem:[#allocation5 + $0x48] sm:$0xff]
        %v240 = vld [vmem:[#allocation5 + $0x50] sm:$0xff]
        %v241 = vld [vmem:[#allocation5 + $0x58] sm:$0xff]
        %v242 = vld [vmem:[#allocation5 + $0x60] sm:$0xff]
        %v243 = vld [vmem:[#allocation5 + $0x68] sm:$0xff]
        %v244 = vld [vmem:[#allocation5 + $0x70] sm:$0xff]
        %v245 = vld [vmem:[#allocation5 + $0x78] sm:$0xff]
        %v246 = vld [vmem:[#allocation7] sm:$0x1]
        %v248 = vperm.slane %v246, 0
        %250 = vmatpush.msra.mxu0 %v245
        %251 = vmatpush.msra.mxu0 %v244
        %252 = vmatpush.msra.mxu0 %v243
        %253 = vmatpush.msra.mxu0 %v242
        %254 = vmatpush.msra.mxu0 %v241
        %255 = vmatpush.msra.mxu0 %v240
        %256 = vmatpush.msra.mxu0 %v239
        %257 = vmatpush.msra.mxu0 %v238
        %258 = vmatpush.msra.mxu0 %v237
        %259 = vmatpush.msra.mxu0 %v236
        %260 = vmatpush.msra.mxu0 %v235
        %261 = vmatpush.msra.mxu0 %v234
        %262 = vmatpush.msra.mxu0 %v233
        %263 = vmatpush.msra.mxu0 %v232
        %264 = vmatpush.msra.mxu0 %v231
        %265 = vmatpush.msra.mxu0 %v230
        %266 = vmatmul.f32.gmra.mxu0 %v226
        %v267 = vpop.f32.mrf.mxu0
        %v268 = vadd.f32 %v248, %v267
        %269 = vmatmul.f32.gmra.mxu0 %v227
        %v270 = vpop.f32.mrf.mxu0
        %v271 = vadd.f32 %v248, %v270
        %272 = vmatmul.f32.gmra.mxu0 %v228
        %v273 = vpop.f32.mrf.mxu0
        %v274 = vadd.f32 %v248, %v273
        %275 = vmatmul.f32.gmra.mxu0 %v229
        %v276 = vpop.f32.mrf.mxu0
        %v277 = vadd.f32 %v248, %v276
        %278 = vdwg.mxu0
        %v279 = vmax.f32 %v268, 0.0
        %v280 = vmax.f32 %v271, 0.0
        %v281 = vmax.f32 %v274, 0.0
        %v282 = vmax.f32 %v277, 0.0
        %s283 = scalar_lea.vmem [#allocation5], 128
        %v284 = vld [vmem:[%s283] sm:$0xff]
        %v285 = vld [vmem:[%s283 + $0x8] sm:$0xff]
        %v286 = vld [vmem:[%s283 + $0x10] sm:$0xff]
        %v287 = vld [vmem:[%s283 + $0x18] sm:$0xff]
        %v288 = vld [vmem:[%s283 + $0x20] sm:$0xff]
        %v289 = vld [vmem:[%s283 + $0x28] sm:$0xff]
        %v290 = vld [vmem:[%s283 + $0x30] sm:$0xff]
        %v291 = vld [vmem:[%s283 + $0x38] sm:$0xff]
        %v292 = vld [vmem:[%s283 + $0x40] sm:$0xff]
        %v293 = vld [vmem:[%s283 + $0x48] sm:$0xff]
        %v294 = vld [vmem:[%s283 + $0x50] sm:$0xff]
        %v295 = vld [vmem:[%s283 + $0x58] sm:$0xff]
        %v296 = vld [vmem:[%s283 + $0x60] sm:$0xff]
        %v297 = vld [vmem:[%s283 + $0x68] sm:$0xff]
        %v298 = vld [vmem:[%s283 + $0x70] sm:$0xff]
        %v299 = vld [vmem:[%s283 + $0x78] sm:$0xff]
        %s300 = scalar_lea.vmem [#allocation7], 1
        %v301 = vld [vmem:[%s300] sm:$0x1]
        %v303 = vperm.slane %v301, 0
        %305 = vmatpush.msra.mxu0 %v299
        %306 = vmatpush.msra.mxu0 %v298
        %307 = vmatpush.msra.mxu0 %v297
        %308 = vmatpush.msra.mxu0 %v296
        %309 = vmatpush.msra.mxu0 %v295
        %310 = vmatpush.msra.mxu0 %v294
        %311 = vmatpush.msra.mxu0 %v293
        %312 = vmatpush.msra.mxu0 %v292
        %313 = vmatpush.msra.mxu0 %v291
        %314 = vmatpush.msra.mxu0 %v290
        %315 = vmatpush.msra.mxu0 %v289
        %316 = vmatpush.msra.mxu0 %v288
        %317 = vmatpush.msra.mxu0 %v287
        %318 = vmatpush.msra.mxu0 %v286
        %319 = vmatpush.msra.mxu0 %v285
        %320 = vmatpush.msra.mxu0 %v284
        %321 = vmatmul.f32.gmra.mxu0 %v279
        %v322 = vpop.f32.mrf.mxu0
        %v323 = vadd.f32 %v303, %v322
        %324 = vmatmul.f32.gmra.mxu0 %v280
        %v325 = vpop.f32.mrf.mxu0
        %v326 = vadd.f32 %v303, %v325
        %327 = vmatmul.f32.gmra.mxu0 %v281
        %v328 = vpop.f32.mrf.mxu0
        %v329 = vadd.f32 %v303, %v328
        %330 = vmatmul.f32.gmra.mxu0 %v282
        %v331 = vpop.f32.mrf.mxu0
        %v332 = vadd.f32 %v303, %v331
        %333 = vdwg.mxu0
        %v334 = vmax.f32 %v323, 0.0
        %v335 = vmax.f32 %v326, 0.0
        %v336 = vmax.f32 %v329, 0.0
        %v337 = vmax.f32 %v332, 0.0
        %s338 = scalar_lea.vmem [#allocation5], 256
        %v339 = vld [vmem:[%s338] sm:$0xff]
        %v340 = vld [vmem:[%s338 + $0x8] sm:$0xff]
        %v341 = vld [vmem:[%s338 + $0x10] sm:$0xff]
        %v342 = vld [vmem:[%s338 + $0x18] sm:$0xff]
        %v343 = vld [vmem:[%s338 + $0x20] sm:$0xff]
        %v344 = vld [vmem:[%s338 + $0x28] sm:$0xff]
        %v345 = vld [vmem:[%s338 + $0x30] sm:$0xff]
        %v346 = vld [vmem:[%s338 + $0x38] sm:$0xff]
        %v347 = vld [vmem:[%s338 + $0x40] sm:$0xff]
        %v348 = vld [vmem:[%s338 + $0x48] sm:$0xff]
        %v349 = vld [vmem:[%s338 + $0x50] sm:$0xff]
        %v350 = vld [vmem:[%s338 + $0x58] sm:$0xff]
        %v351 = vld [vmem:[%s338 + $0x60] sm:$0xff]
        %v352 = vld [vmem:[%s338 + $0x68] sm:$0xff]
        %v353 = vld [vmem:[%s338 + $0x70] sm:$0xff]
        %v354 = vld [vmem:[%s338 + $0x78] sm:$0xff]
        %s355 = scalar_lea.vmem [#allocation7], 2
        %v356 = vld [vmem:[%s355] sm:$0x1]
        %v358 = vperm.slane %v356, 0
        %360 = vmatpush.msra.mxu0 %v354
        %361 = vmatpush.msra.mxu0 %v353
        %362 = vmatpush.msra.mxu0 %v352
        %363 = vmatpush.msra.mxu0 %v351
        %364 = vmatpush.msra.mxu0 %v350
        %365 = vmatpush.msra.mxu0 %v349
        %366 = vmatpush.msra.mxu0 %v348
        %367 = vmatpush.msra.mxu0 %v347
        %368 = vmatpush.msra.mxu0 %v346
        %369 = vmatpush.msra.mxu0 %v345
        %370 = vmatpush.msra.mxu0 %v344
        %371 = vmatpush.msra.mxu0 %v343
        %372 = vmatpush.msra.mxu0 %v342
        %373 = vmatpush.msra.mxu0 %v341
        %374 = vmatpush.msra.mxu0 %v340
        %375 = vmatpush.msra.mxu0 %v339
        %376 = vmatmul.f32.gmra.mxu0 %v334
        %v377 = vpop.f32.mrf.mxu0
        %v378 = vadd.f32 %v358, %v377
        %379 = vmatmul.f32.gmra.mxu0 %v335
        %v380 = vpop.f32.mrf.mxu0
        %v381 = vadd.f32 %v358, %v380
        %382 = vmatmul.f32.gmra.mxu0 %v336
        %v383 = vpop.f32.mrf.mxu0
        %v384 = vadd.f32 %v358, %v383
        %385 = vmatmul.f32.gmra.mxu0 %v337
        %v386 = vpop.f32.mrf.mxu0
        %v387 = vadd.f32 %v358, %v386
        %388 = vdwg.mxu0
        %v389 = vmax.f32 %v378, 0.0
        %v390 = vmax.f32 %v381, 0.0
        %v391 = vmax.f32 %v384, 0.0
        %v392 = vmax.f32 %v387, 0.0
        %s393 = scalar_lea.vmem [#allocation5], 384
        %v394 = vld [vmem:[%s393] sm:$0xff]
        %v395 = vld [vmem:[%s393 + $0x8] sm:$0xff]
        %v396 = vld [vmem:[%s393 + $0x10] sm:$0xff]
        %v397 = vld [vmem:[%s393 + $0x18] sm:$0xff]
        %v398 = vld [vmem:[%s393 + $0x20] sm:$0xff]
        %v399 = vld [vmem:[%s393 + $0x28] sm:$0xff]
        %v400 = vld [vmem:[%s393 + $0x30] sm:$0xff]
        %v401 = vld [vmem:[%s393 + $0x38] sm:$0xff]
        %v402 = vld [vmem:[%s393 + $0x40] sm:$0xff]
        %v403 = vld [vmem:[%s393 + $0x48] sm:$0xff]
        %v404 = vld [vmem:[%s393 + $0x50] sm:$0xff]
        %v405 = vld [vmem:[%s393 + $0x58] sm:$0xff]
        %v406 = vld [vmem:[%s393 + $0x60] sm:$0xff]
        %v407 = vld [vmem:[%s393 + $0x68] sm:$0xff]
        %v408 = vld [vmem:[%s393 + $0x70] sm:$0xff]
        %v409 = vld [vmem:[%s393 + $0x78] sm:$0xff]
        %s410 = scalar_lea.vmem [#allocation7], 3
        %v411 = vld [vmem:[%s410] sm:$0x1]
        %v413 = vperm.slane %v411, 0
        %415 = vmatpush.msra.mxu0 %v409
        %416 = vmatpush.msra.mxu0 %v408
        %417 = vmatpush.msra.mxu0 %v407
        %418 = vmatpush.msra.mxu0 %v406
        %419 = vmatpush.msra.mxu0 %v405
        %420 = vmatpush.msra.mxu0 %v404
        %421 = vmatpush.msra.mxu0 %v403
        %422 = vmatpush.msra.mxu0 %v402
        %423 = vmatpush.msra.mxu0 %v401
        %424 = vmatpush.msra.mxu0 %v400
        %425 = vmatpush.msra.mxu0 %v399
        %426 = vmatpush.msra.mxu0 %v398
        %427 = vmatpush.msra.mxu0 %v397
        %428 = vmatpush.msra.mxu0 %v396
        %429 = vmatpush.msra.mxu0 %v395
        %430 = vmatpush.msra.mxu0 %v394
        %431 = vmatmul.f32.gmra.mxu0 %v389
        %v432 = vpop.f32.mrf.mxu0
        %v433 = vadd.f32 %v413, %v432
        %434 = vmatmul.f32.gmra.mxu0 %v390
        %v435 = vpop.f32.mrf.mxu0
        %v436 = vadd.f32 %v413, %v435
        %437 = vmatmul.f32.gmra.mxu0 %v391
        %v438 = vpop.f32.mrf.mxu0
        %v439 = vadd.f32 %v413, %v438
        %440 = vmatmul.f32.gmra.mxu0 %v392
        %v441 = vpop.f32.mrf.mxu0
        %v442 = vadd.f32 %v413, %v441
        %443 = vdwg.mxu0
        %v444 = vmax.f32 %v433, 0.0
        %v445 = vmax.f32 %v436, 0.0
        %v446 = vmax.f32 %v439, 0.0
        %v447 = vmax.f32 %v442, 0.0
        %s448 = scalar_lea.vmem [#allocation5], 512
        %v449 = vld [vmem:[%s448] sm:$0xff]
        %v450 = vld [vmem:[%s448 + $0x8] sm:$0xff]
        %v451 = vld [vmem:[%s448 + $0x10] sm:$0xff]
        %v452 = vld [vmem:[%s448 + $0x18] sm:$0xff]
        %v453 = vld [vmem:[%s448 + $0x20] sm:$0xff]
        %v454 = vld [vmem:[%s448 + $0x28] sm:$0xff]
        %v455 = vld [vmem:[%s448 + $0x30] sm:$0xff]
        %v456 = vld [vmem:[%s448 + $0x38] sm:$0xff]
        %v457 = vld [vmem:[%s448 + $0x40] sm:$0xff]
        %v458 = vld [vmem:[%s448 + $0x48] sm:$0xff]
        %v459 = vld [vmem:[%s448 + $0x50] sm:$0xff]
        %v460 = vld [vmem:[%s448 + $0x58] sm:$0xff]
        %v461 = vld [vmem:[%s448 + $0x60] sm:$0xff]
        %v462 = vld [vmem:[%s448 + $0x68] sm:$0xff]
        %v463 = vld [vmem:[%s448 + $0x70] sm:$0xff]
        %v464 = vld [vmem:[%s448 + $0x78] sm:$0xff]
        %s465 = scalar_lea.vmem [#allocation7], 4
        %v466 = vld [vmem:[%s465] sm:$0x1]
        %v468 = vperm.slane %v466, 0
        %470 = vmatpush.msra.mxu0 %v464
        %471 = vmatpush.msra.mxu0 %v463
        %472 = vmatpush.msra.mxu0 %v462
        %473 = vmatpush.msra.mxu0 %v461
        %474 = vmatpush.msra.mxu0 %v460
        %475 = vmatpush.msra.mxu0 %v459
        %476 = vmatpush.msra.mxu0 %v458
        %477 = vmatpush.msra.mxu0 %v457
        %478 = vmatpush.msra.mxu0 %v456
        %479 = vmatpush.msra.mxu0 %v455
        %480 = vmatpush.msra.mxu0 %v454
        %481 = vmatpush.msra.mxu0 %v453
        %482 = vmatpush.msra.mxu0 %v452
        %483 = vmatpush.msra.mxu0 %v451
        %484 = vmatpush.msra.mxu0 %v450
        %485 = vmatpush.msra.mxu0 %v449
        %486 = vmatmul.f32.gmra.mxu0 %v444
        %v487 = vpop.f32.mrf.mxu0
        %v488 = vadd.f32 %v468, %v487
        %489 = vmatmul.f32.gmra.mxu0 %v445
        %v490 = vpop.f32.mrf.mxu0
        %v491 = vadd.f32 %v468, %v490
        %492 = vmatmul.f32.gmra.mxu0 %v446
        %v493 = vpop.f32.mrf.mxu0
        %v494 = vadd.f32 %v468, %v493
        %495 = vmatmul.f32.gmra.mxu0 %v447
        %v496 = vpop.f32.mrf.mxu0
        %v497 = vadd.f32 %v468, %v496
        %498 = vdwg.mxu0
        %v499 = vmax.f32 %v488, 0.0
        %v500 = vmax.f32 %v491, 0.0
        %v501 = vmax.f32 %v494, 0.0
        %v502 = vmax.f32 %v497, 0.0
        %s503 = scalar_lea.vmem [#allocation5], 640
        %v504 = vld [vmem:[%s503] sm:$0xff]
        %v505 = vld [vmem:[%s503 + $0x8] sm:$0xff]
        %v506 = vld [vmem:[%s503 + $0x10] sm:$0xff]
        %v507 = vld [vmem:[%s503 + $0x18] sm:$0xff]
        %v508 = vld [vmem:[%s503 + $0x20] sm:$0xff]
        %v509 = vld [vmem:[%s503 + $0x28] sm:$0xff]
        %v510 = vld [vmem:[%s503 + $0x30] sm:$0xff]
        %v511 = vld [vmem:[%s503 + $0x38] sm:$0xff]
        %v512 = vld [vmem:[%s503 + $0x40] sm:$0xff]
        %v513 = vld [vmem:[%s503 + $0x48] sm:$0xff]
        %v514 = vld [vmem:[%s503 + $0x50] sm:$0xff]
        %v515 = vld [vmem:[%s503 + $0x58] sm:$0xff]
        %v516 = vld [vmem:[%s503 + $0x60] sm:$0xff]
        %v517 = vld [vmem:[%s503 + $0x68] sm:$0xff]
        %v518 = vld [vmem:[%s503 + $0x70] sm:$0xff]
        %v519 = vld [vmem:[%s503 + $0x78] sm:$0xff]
        %s520 = scalar_lea.vmem [#allocation7], 5
        %v521 = vld [vmem:[%s520] sm:$0x1]
        %v523 = vperm.slane %v521, 0
        %525 = vmatpush.msra.mxu0 %v519
        %526 = vmatpush.msra.mxu0 %v518
        %527 = vmatpush.msra.mxu0 %v517
        %528 = vmatpush.msra.mxu0 %v516
        %529 = vmatpush.msra.mxu0 %v515
        %530 = vmatpush.msra.mxu0 %v514
        %531 = vmatpush.msra.mxu0 %v513
        %532 = vmatpush.msra.mxu0 %v512
        %533 = vmatpush.msra.mxu0 %v511
        %534 = vmatpush.msra.mxu0 %v510
        %535 = vmatpush.msra.mxu0 %v509
        %536 = vmatpush.msra.mxu0 %v508
        %537 = vmatpush.msra.mxu0 %v507
        %538 = vmatpush.msra.mxu0 %v506
        %539 = vmatpush.msra.mxu0 %v505
        %540 = vmatpush.msra.mxu0 %v504
        %541 = vmatmul.f32.gmra.mxu0 %v499
        %v542 = vpop.f32.mrf.mxu0
        %v543 = vadd.f32 %v523, %v542
        %544 = vmatmul.f32.gmra.mxu0 %v500
        %v545 = vpop.f32.mrf.mxu0
        %v546 = vadd.f32 %v523, %v545
        %547 = vmatmul.f32.gmra.mxu0 %v501
        %v548 = vpop.f32.mrf.mxu0
        %v549 = vadd.f32 %v523, %v548
        %550 = vmatmul.f32.gmra.mxu0 %v502
        %v551 = vpop.f32.mrf.mxu0
        %v552 = vadd.f32 %v523, %v551
        %553 = vdwg.mxu0
        %v554 = vtanh.pop %v543
        %v555 = vtanh.pop %v546
        %v556 = vtanh.pop %v549
        %v557 = vtanh.pop %v552
        %558 = vst [vmem:[%s223] sm:$0xff] %v554
        %559 = vst [vmem:[%s223 + $0x8] sm:$0xff] %v555
        %560 = vst [vmem:[%s223 + $0x10] sm:$0xff] %v556
        %561 = vst [vmem:[%s223 + $0x18] sm:$0xff] %v557
        %s562 = sand.u32 %s97, 1
        %s563 = scalar_lea.sflag [#allocation4], %s562
        %s564 = sand.u32 %s97, 1
        %s565 = smul.addr %s564, 32
        %s566 = scalar_lea.vmem [#allocation8], %s565
        // Predicated region
        $region45: #{tpu_custom_call.1} parent=31 // pred_check
          %p567 = pneg %p107
        $region46: #{tpu_custom_call.1} parent=31 // pred_check_branch
          %569 = sbr.rel (%p567) target = $region48
        $region47: #{tpu_custom_call.1} parent=31 // pred_region
          %s570 = smul.u32 4, %s21
          %572 = vsyncadd %s563, 0
          %s573 = smul.addr %s570, 8
          %s574 = scalar_lea.hbm %s3, %s573
          %s575 = sshll.u32 %s566, 4
          %s576 = int_to_ptr.vmem [resolvable:$true] %s575
          %s577 = sshll.u32 %s574, 4
          %s578 = int_to_ptr.hbm [resolvable:$true] %s577
          %583 = dma.vmem_to_hbm [thread:$0]  %s576, 512, %s578, %s563, 128, 128, 8
        $region48: #{tpu_custom_call.1} parent=31 // pred_fallthru
          _
      $region32: #{tpu_custom_call.1} parent=5 // pred_fallthru
        _
      %p584 = scmp.le.s32.totalorder 2, %s16
      // Predicated region
      $region49: #{tpu_custom_call.1} parent=5 // pred_check
        %p585 = pneg %p584
      $region50: #{tpu_custom_call.1} parent=5 // pred_check_branch
        %587 = sbr.rel (%p585) target = $region52
      $region51: #{tpu_custom_call.1} parent=5 // pred_region
        %s588 = ssub.s32 %s16, 2
        // Predicated region
        $region53: #{tpu_custom_call.1} parent=51 // pred_check
          %p589 = pneg %p113
        $region54: #{tpu_custom_call.1} parent=51 // pred_check_branch
          %591 = sbr.rel (%p589) target = $region56
        $region55: #{tpu_custom_call.1} parent=51 // pred_region
          %s592 = sand.u32 %s98, 1
          %s593 = scalar_lea.sflag [#allocation4], %s592
          %s594 = sand.u32 %s98, 1
          %s595 = smul.addr %s594, 32
          %s596 = scalar_lea.vmem [#allocation8], %s595
          %598 = dma.done %s593, 512
        $region56: #{tpu_custom_call.1} parent=51 // pred_fallthru
          _
      $region52: #{tpu_custom_call.1} parent=5 // pred_fallthru
        _
    $region6: #{tpu_custom_call.1} parent=1 // loop_footer
      %s20 = sadd.s32 1, %s16
    $region7: #{tpu_custom_call.1} parent=1 // loop_footer_branch
      %15 = sbr.rel target = $region3
    $region8: #{tpu_custom_call.1} parent=1 // loop_exit
      _
    %599 = vsyncpa [#allocation3], 1
    %s600 = scalar_lea.sflag [#allocation3], 1
    %601 = vsyncpa %s600, 1
    %602 = vsyncpa [#allocation6], 1
    %603 = vsyncpa [#allocation4], 1
    %s604 = scalar_lea.sflag [#allocation4], 1
    %605 = vsyncpa %s604, 1

</llo_original>
